<compile_context>
chip_gen: v5e
topology: v5e:2x2
jax: 0.10.0
libtpu: 0.0.40
codegen_flags: <defaults>
</compile_context>

<pallas_src>
import jax
import jax.numpy as jnp
from jax.experimental import pallas as pl
from jax.experimental.pallas import tpu as pltpu


def _pick_tile(n, pref=512):
    """Largest lane-dense tile <= pref that divides n (scan down from pref)."""
    for t in (512, 384, 256, 128, 64, 32, 16, 8):
        if t <= pref and t <= n and n % t == 0:
            return t
    return n


# --------------------------------------------------------------------------
# Kernel 1: tiled similarity matmul + intra / inter batch masking
# --------------------------------------------------------------------------
def _sim_kernel(xr_ref, xc_ref, bid_r_ref, bid_c_ref, s_intra_ref, s_inter_ref):
    xr = xr_ref[...]                                   # (TM, d) bf16
    xc = xc_ref[...]                                   # (TN, d) bf16
    # S = Xr @ Xc.T  (contract feature dims -> MXU, f32 accumulate)
    s = jax.lax.dot_general(
        xr, xc,
        dimension_numbers=(((1,), (1,)), ((), ())),
        preferred_element_type=jnp.float32,
    )                                                  # (TM, TN) f32

    same = bid_r_ref[...] == bid_c_ref[...]            # (TM,1)==(1,TN) -> (TM,TN)

    tm, tn = s.shape
    i = pl.program_id(0)
    j = pl.program_id(1)
    row_g = i * tm + jax.lax.broadcasted_iota(jnp.int32, (tm, tn), 0)
    col_g = j * tn + jax.lax.broadcasted_iota(jnp.int32, (tm, tn), 1)
    not_diag = row_g != col_g

    neg = jnp.float32(-1e30)
    # intra: same-batch, non-self entries survive; inter: cross-batch entries.
    s_intra_ref[...] = jnp.where(same & not_diag, s, neg).astype(s_intra_ref.dtype)
    s_inter_ref[...] = jnp.where(same, neg, s).astype(s_inter_ref.dtype)


def similarity_pallas(x, batch_id, tile=512):
    n, d = x.shape
    t = _pick_tile(n, tile)
    x16 = x.astype(jnp.bfloat16)
    bid_r = batch_id.astype(jnp.int32).reshape(n, 1)
    bid_c = batch_id.astype(jnp.int32).reshape(1, n)
    grid = (n // t, n // t)
    # TODO(synk): bf16 similarity storage can flip near-tie top_k picks vs f32
    # torch reference; switch outputs to f32 if exact fidelity is required.
    return pl.pallas_call(
        _sim_kernel,
        out_shape=(jax.ShapeDtypeStruct((n, n), jnp.bfloat16),
                   jax.ShapeDtypeStruct((n, n), jnp.bfloat16)),
        grid=grid,
        in_specs=[pl.BlockSpec((t, d), lambda i, j: (i, 0)),     # row features
                  pl.BlockSpec((t, d), lambda i, j: (j, 0)),     # col features
                  pl.BlockSpec((t, 1), lambda i, j: (i, 0)),     # batch ids (rows)
                  pl.BlockSpec((1, t), lambda i, j: (0, j))],    # batch ids (cols)
        out_specs=(pl.BlockSpec((t, t), lambda i, j: (i, j)),
                   pl.BlockSpec((t, t), lambda i, j: (i, j))),
        compiler_params=pltpu.CompilerParams(
            dimension_semantics=("parallel", "parallel")),
    )(x16, x16, bid_r, bid_c)


# --------------------------------------------------------------------------
# Kernel 2: mutual-kNN "common" graph -> 0/1 pos mask (tiled, int8 out)
# --------------------------------------------------------------------------
def _common_mask(nbr_r, nbr_ct):
    """common[a,b] = (b in nbr(a)) & (a in nbr(b)) & (a != b) for the tile."""
    tm, k = nbr_r.shape
    tn = nbr_ct.shape[1]
    i = pl.program_id(0)
    j = pl.program_id(1)
    row_ids = i * tm + jax.lax.broadcasted_iota(jnp.int32, (tm, 1), 0)   # (TM,1)
    col_ids = j * tn + jax.lax.broadcasted_iota(jnp.int32, (1, tn), 1)   # (1,TN)

    # K unrolled VPU compares per element (K is small); no (TM,K,TN) temporaries.
    m_fwd = nbr_r[:, 0:1] == col_ids          # b in nbr(a)   (TM,TN)
    m_bwd = nbr_ct[0:1, :] == row_ids         # a in nbr(b)   (TM,TN)
    for kk in range(1, k):
        m_fwd = m_fwd | (nbr_r[:, kk:kk + 1] == col_ids)
        m_bwd = m_bwd | (nbr_ct[kk:kk + 1, :] == row_ids)
    return m_fwd & m_bwd & (row_ids != col_ids)


def _pos_kernel_nolabel(nbr_r_ref, nbr_ct_ref, pos_ref):
    # Torch-faithful path: the label gate in the original reduces to a no-op,
    # so pos = common*(adj+1) and nonzero(pos) == nonzero(common) for adj >= 0.
    pos_ref[...] = _common_mask(nbr_r_ref[...], nbr_ct_ref[...]).astype(pos_ref.dtype)


def _pos_kernel_label(nbr_r_ref, nbr_ct_ref, adj_ref, oh_r_ref, oh_c_ref, pos_ref):
    common = _common_mask(nbr_r_ref[...], nbr_ct_ref[...])
    # cluster-label agreement as an MXU one-hot matmul: (TM,CK) @ (TN,CK).T
    agree = jax.lax.dot_general(
        oh_r_ref[...], oh_c_ref[...],
        dimension_numbers=(((1,), (1,)), ((), ())),
        preferred_element_type=jnp.float32) > 0.5
    edge = (adj_ref[...] != 0) | agree        # locality-or-globality nonzero pattern
    pos_ref[...] = (common & edge).astype(pos_ref.dtype)


def pos_pallas(nbr_idx, adj_mask_i8=None, labels_onehot=None, tile=512):
    n, k = nbr_idx.shape
    t = _pick_tile(n, tile)
    grid = (n // t, n // t)
    nbr_t = nbr_idx.T                                   # (K, N) int32, tiny

    in_specs = [pl.BlockSpec((t, k), lambda i, j: (i, 0)),   # row anchors' neighbors
                pl.BlockSpec((k, t), lambda i, j: (0, j))]   # col anchors' neighbors
    args = [nbr_idx, nbr_t]

    if labels_onehot is None:
        kern = _pos_kernel_nolabel
    else:
        ck = labels_onehot.shape[1]
        in_specs += [pl.BlockSpec((t, t), lambda i, j: (i, j)),     # adj nonzero mask
                     pl.BlockSpec((t, ck), lambda i, j: (i, 0)),
                     pl.BlockSpec((t, ck), lambda i, j: (j, 0))]
        args += [adj_mask_i8, labels_onehot, labels_onehot]
        kern = _pos_kernel_label

    return pl.pallas_call(
        kern,
        out_shape=jax.ShapeDtypeStruct((n, n), jnp.int8),
        grid=grid,
        in_specs=in_specs,
        out_specs=pl.BlockSpec((t, t), lambda i, j: (i, j)),
        compiler_params=pltpu.CompilerParams(
            dimension_semantics=("parallel", "parallel")),
    )(*args)


# --------------------------------------------------------------------------
# Glue: deterministic KMeans substitute (Lloyd's algorithm)
# --------------------------------------------------------------------------
# TODO(synk): original module calls sklearn.cluster.KMeans (or R mclust); not
# reproducible bit-for-bit on TPU -- replaced with a deterministic Lloyd loop.
def simple_kmeans_labels(x, k, seed, iters=10):
    key = jax.random.PRNGKey(seed)
    init_idx = jax.random.choice(key, x.shape[0], (k,), replace=False)
    cent = x[init_idx]
    lab = jnp.zeros((x.shape[0],), jnp.int32)
    for _ in range(iters):
        d2 = ((x[:, None, :] - cent[None, :, :]) ** 2).sum(-1)
        lab = jnp.argmin(d2, axis=1).astype(jnp.int32)
        onehot = jax.nn.one_hot(lab, k, dtype=jnp.float32)
        counts = onehot.sum(0)[:, None]
        cent = (onehot.T @ x) / jnp.maximum(counts, 1.0)
    return lab


# --------------------------------------------------------------------------
# GLNSampler_BC.forward
# --------------------------------------------------------------------------
class GLNSamplerBC:
    def __init__(self, num_centroids):
        self.num_centroids = num_centroids
        self.num_clusterings = 5

    def forward(self, adj, enc_rep, batch_id, top_k, top_k_inter, rng_key,
                use_label_gate=False, tile=512):
        n, d = enc_rep.shape

        # ---- Integrated_3D_graph (similarity metric) ------------------------
        s_intra, s_inter = similarity_pallas(enc_rep, batch_id, tile)   # kernel 1
        # diagonal masked in-kernel -> take top_k directly (no k+1 / drop-self)
        _, intra_idx = jax.lax.top_k(s_intra, top_k)                    # (N, top_k)
        _, inter_idx = jax.lax.top_k(s_inter, top_k_inter)              # (N, top_k_inter)
        # TODO(synk): original clamps k to (group_size - 1) per batch group; here we
        # assume top_k / top_k_inter are smaller than every batch-group size.

        nbr_idx = jnp.concatenate([intra_idx, inter_idx], axis=1).astype(jnp.int32)

        # ---- optional clustering-label gate ---------------------------------
        # TODO(synk): in the original torch code the cluster-label gate is a provable
        # no-op ((eq | bool_mask) & bool_mask == bool_mask); default path skips the
        # KMeans pipeline and reproduces the torch nonzero pattern exactly.
        labels_onehot = None
        adj_mask = None
        if use_label_gate:
            labels = jnp.stack(
                [simple_kmeans_labels(enc_rep, self.num_centroids, s + 3407)
                 for s in range(self.num_clusterings)], axis=0)          # (C, N)
            oh = jax.nn.one_hot(labels, self.num_centroids, dtype=jnp.bfloat16)
            oh = jnp.transpose(oh, (1, 0, 2)).reshape(n, -1)             # (N, C*K)
            ck = oh.shape[1]
            ck_pad = max(128, ((ck + 127) // 128) * 128)                 # lane-dense
            labels_onehot = jnp.pad(oh, ((0, 0), (0, ck_pad - ck)))
            adj_mask = (adj != 0).astype(jnp.int8)                       # pattern only

        # ---- mutual-kNN common graph -> 0/1 pos mask ------------------------
        # TODO(synk): no-label path assumes adj >= 0 so nonzero(common*(adj+1))
        # == nonzero(common); if adj can be negative, keep the weighted path.
        pos = pos_pallas(nbr_idx, adj_mask, labels_onehot, tile)         # kernel 2

        # sparse coalesce + nonzero  ==  nonzero of the dense pos mask
        # TODO(synk): jnp.nonzero has data-dependent size -> keep outside jit.
        anchor_idx, positive_idx = jnp.nonzero(pos)

        # TODO(synk): torch uses python random.choices for negatives; jax PRNG used.
        negative = jax.random.randint(rng_key, (anchor_idx.shape[0],), 0, n)
        return anchor_idx, positive_idx, negative


# --------------------------------------------------------------------------
if __name__ == "__main__":
    key = jax.random.PRNGKey(0)
    k_rep, k_adj, k_neg = jax.random.split(key, 3)

    N, D = 256, 32
    enc_rep = jax.random.normal(k_rep, (N, D), dtype=jnp.float32)
    adj = (jax.random.uniform(k_adj, (N, N)) > 0.5).astype(jnp.float32)
    # two batches of 128 samples each
    batch_id = jnp.concatenate(
        [jnp.zeros((N // 2,), jnp.int32), jnp.ones((N // 2,), jnp.int32)])

    sampler = GLNSamplerBC(num_centroids=3)

    # default (torch-faithful) path
    anchor, positive, negative = sampler.forward(
        adj, enc_rep, batch_id, top_k=4, top_k_inter=3, rng_key=k_neg)
    jax.block_until_ready((anchor, positive, negative))
    assert anchor.shape == positive.shape == negative.shape

    # optional label-gated globality path (exercises the MXU one-hot agreement)
    a2, p2, n2 = sampler.forward(
        adj, enc_rep, batch_id, top_k=4, top_k_inter=3, rng_key=k_neg,
        use_label_gate=True)
    jax.block_until_ready((a2, p2, n2))
    assert a2.shape == p2.shape == n2.shape

    print("KERNEL_OK")
</pallas_src>

<mosaic_0001>
module attributes {stable_mosaic.version = 11 : i64} {
  func.func @_sim_kernel(%arg0: i32, %arg1: i32, %arg2: memref<256x32xbf16, #tpu.memory_space<vmem>>, %arg3: memref<256x32xbf16, #tpu.memory_space<vmem>>, %arg4: memref<256x1xi32, #tpu.memory_space<vmem>>, %arg5: memref<1x256xi32, #tpu.memory_space<vmem>>, %arg6: memref<256x256xbf16, #tpu.memory_space<vmem>>, %arg7: memref<256x256xbf16, #tpu.memory_space<vmem>>) attributes {dimension_semantics = [#tpu.dimension_semantics<parallel>, #tpu.dimension_semantics<parallel>], iteration_bounds = array<i64: 1, 1>, scalar_prefetch = 0 : i64, scratch_operands = 0 : i64, tpu.core_type = #tpu.core_type<tc>, window_params = [{transform_indices = @transform_0, window_bounds = array<i64: 256, 32>}, {transform_indices = @transform_1, window_bounds = array<i64: 256, 32>}, {transform_indices = @transform_2, window_bounds = array<i64: 256, 1>}, {transform_indices = @transform_3, window_bounds = array<i64: 1, 256>}, {transform_indices = @transform_4, window_bounds = array<i64: 256, 256>}, {transform_indices = @transform_5, window_bounds = array<i64: 256, 256>}]} {
    %c0 = arith.constant 0 : index
    %c0_0 = arith.constant 0 : index
    %0 = vector.load %arg2[%c0, %c0_0] : memref<256x32xbf16, #tpu.memory_space<vmem>>, vector<256x32xbf16>
    %c0_1 = arith.constant 0 : index
    %c0_2 = arith.constant 0 : index
    %1 = vector.load %arg3[%c0_1, %c0_2] : memref<256x32xbf16, #tpu.memory_space<vmem>>, vector<256x32xbf16>
    %cst = arith.constant dense<0.000000e+00> : vector<256x256xf32>
    %2 = tpu.matmul %0, %1, %cst {dimension_numbers = #tpu.dot_dimension_numbers<[1], [1], [0], [0], [0, 0, 1, 0], [], []>} : vector<256x32xbf16>, vector<256x32xbf16>, vector<256x256xf32> -> vector<256x256xf32>
    %c0_3 = arith.constant 0 : index
    %c0_4 = arith.constant 0 : index
    %3 = vector.load %arg4[%c0_3, %c0_4] : memref<256x1xi32, #tpu.memory_space<vmem>>, vector<256x1xi32>
    %c0_5 = arith.constant 0 : index
    %c0_6 = arith.constant 0 : index
    %4 = vector.load %arg5[%c0_5, %c0_6] : memref<1x256xi32, #tpu.memory_space<vmem>>, vector<1x256xi32>
    %5 = vector.broadcast %3 : vector<256x1xi32> to vector<256x256xi32>
    %6 = vector.broadcast %4 : vector<1x256xi32> to vector<256x256xi32>
    %7 = arith.cmpi eq, %5, %6 : vector<256x256xi32>
    %c256_i32 = arith.constant 256 : i32
    %8 = arith.muli %arg0, %c256_i32 : i32
    %9 = tpu.iota {dimensions = array<i32: 0>} : vector<256x256xi32>
    %10 = vector.broadcast %8 : i32 to vector<256x256xi32>
    %11 = arith.addi %10, %9 : vector<256x256xi32>
    %c256_i32_7 = arith.constant 256 : i32
    %12 = arith.muli %arg1, %c256_i32_7 : i32
    %13 = tpu.iota {dimensions = array<i32: 1>} : vector<256x256xi32>
    %14 = vector.broadcast %12 : i32 to vector<256x256xi32>
    %15 = arith.addi %14, %13 : vector<256x256xi32>
    %16 = arith.cmpi ne, %11, %15 : vector<256x256xi32>
    %17 = arith.andi %7, %16 : vector<256x256xi1>
    %cst_8 = arith.constant -1.000000e+30 : f32
    %18 = vector.broadcast %cst_8 : f32 to vector<256x256xf32>
    %19 = arith.select %17, %2, %18 : vector<256x256xi1>, vector<256x256xf32>
    %20 = arith.truncf %19 : vector<256x256xf32> to vector<256x256xbf16>
    %c0_9 = arith.constant 0 : index
    %c0_10 = arith.constant 0 : index
    %21 = vector.load %arg6[%c0_9, %c0_10] : memref<256x256xbf16, #tpu.memory_space<vmem>>, vector<256x256xbf16>
    tpu.vector_store %arg6[%c0_9, %c0_10], %20 {strides = array<i32>} : memref<256x256xbf16, #tpu.memory_space<vmem>>, vector<256x256xbf16>,
    %cst_11 = arith.constant -1.000000e+30 : f32
    %22 = vector.broadcast %cst_11 : f32 to vector<256x256xf32>
    %23 = arith.select %7, %22, %2 : vector<256x256xi1>, vector<256x256xf32>
    %24 = arith.truncf %23 : vector<256x256xf32> to vector<256x256xbf16>
    %c0_12 = arith.constant 0 : index
    %c0_13 = arith.constant 0 : index
    %25 = vector.load %arg7[%c0_12, %c0_13] : memref<256x256xbf16, #tpu.memory_space<vmem>>, vector<256x256xbf16>
    tpu.vector_store %arg7[%c0_12, %c0_13], %24 {strides = array<i32>} : memref<256x256xbf16, #tpu.memory_space<vmem>>, vector<256x256xbf16>,
    return
  }
  func.func @transform_0(%arg0: i32, %arg1: i32) -> (i32, i32) {
    %c0_i32 = arith.constant 0 : i32
    %c0_i32_0 = arith.constant 0 : i32
    return %arg0, %c0_i32 : i32, i32
  }
  func.func @transform_1(%arg0: i32, %arg1: i32) -> (i32, i32) {
    %c0_i32 = arith.constant 0 : i32
    %c0_i32_0 = arith.constant 0 : i32
    return %arg1, %c0_i32 : i32, i32
  }
  func.func @transform_2(%arg0: i32, %arg1: i32) -> (i32, i32) {
    %c0_i32 = arith.constant 0 : i32
    %c0_i32_0 = arith.constant 0 : i32
    return %arg0, %c0_i32 : i32, i32
  }
  func.func @transform_3(%arg0: i32, %arg1: i32) -> (i32, i32) {
    %c0_i32 = arith.constant 0 : i32
    %c0_i32_0 = arith.constant 0 : i32
    return %c0_i32, %arg1 : i32, i32
  }
  func.func @transform_4(%arg0: i32, %arg1: i32) -> (i32, i32) {
    %c0_i32 = arith.constant 0 : i32
    return %arg0, %arg1 : i32, i32
  }
  func.func @transform_5(%arg0: i32, %arg1: i32) -> (i32, i32) {
    %c0_i32 = arith.constant 0 : i32
    return %arg0, %arg1 : i32, i32
  }
}

</mosaic_0001>

<llo_original>
// kernel: tpu_custom_call.1
$region0: #{tpu_custom_call.1}
  #allocation0 [shape = 'u32[]', space=smem, size = 0x4, offset = 0x4, fixed_abs, tag = 'smem constant byte address 0x4 - core index']
  #allocation1 [shape = 'u32[72,128]{1,0:T(1,128)}', space=vmem, size = 0x9000, scoped, tag = 'internal scratch']
  %s0 = inlined_call_operand.vmem [shape: bf16[256,32], index: 0, kind: input, shape index: {}]
  %s1 = inlined_call_operand.vmem [shape: bf16[256,32], index: 1, kind: input, shape index: {}]
  %s2 = inlined_call_operand.vmem [shape: s32[256,1], index: 2, kind: input, shape index: {}]
  %s3 = inlined_call_operand.vmem [shape: s32[1,256], index: 3, kind: input, shape index: {}]
  %s4 = inlined_call_operand.hbm [shape: bf16[256,256], index: 4, kind: output, shape index: {0}]
  %s5 = inlined_call_operand.hbm [shape: bf16[256,256], index: 5, kind: output, shape index: {1}]
  %6 = xla_tuple %s4, %s5
  %s7 = sld [smem:[#allocation0]]
  $region34: #{tpu_custom_call.1} parent=0
    _
  %s9 = ssub.s32 1, %s7
  %s10 = scalar_select 0, %s9, %s7
  $region1: #{tpu_custom_call.1} parent=0
    #allocation2 [shape = 'u8[131072]{0}', space=vmem, size = 0x20000, scoped, tag = 'output window, operand 0, single buffered']
    #allocation3 [shape = 's32[1]{0}', space=sflag, size = 0x4, scoped, tag = 'scoped memory for tpu_custom_call.1']
    #allocation4 [shape = 'u8[131072]{0}', space=vmem, size = 0x20000, scoped, tag = 'output window, operand 1, single buffered']
    #allocation5 [shape = 's32[1]{0}', space=sflag, size = 0x4, scoped, tag = 'scoped memory for tpu_custom_call.1']
    %11 = vsyncpa [#allocation3], 0
    %12 = vsyncpa [#allocation5], 0
    // Predicated region
    $region2: #{tpu_custom_call.1} parent=1 // pred_check
      _
    $region3: #{tpu_custom_call.1} parent=1 // pred_check_branch
      %14 = sbr.rel (0) target = $region5
    $region4: #{tpu_custom_call.1} parent=1 // pred_region
      _
    $region5: #{tpu_custom_call.1} parent=1 // pred_fallthru
      _
    // Predicated region
    $region6: #{tpu_custom_call.1} parent=1 // pred_check
      _
    $region7: #{tpu_custom_call.1} parent=1 // pred_check_branch
      %16 = sbr.rel (0) target = $region9
    $region8: #{tpu_custom_call.1} parent=1 // pred_region
      _
    $region9: #{tpu_custom_call.1} parent=1 // pred_fallthru
      _
    // Predicated region
    $region10: #{tpu_custom_call.1} parent=1 // pred_check
      _
    $region11: #{tpu_custom_call.1} parent=1 // pred_check_branch
      %18 = sbr.rel (0) target = $region13
    $region12: #{tpu_custom_call.1} parent=1 // pred_region
      _
    $region13: #{tpu_custom_call.1} parent=1 // pred_fallthru
      _
    // Predicated region
    $region14: #{tpu_custom_call.1} parent=1 // pred_check
      _
    $region15: #{tpu_custom_call.1} parent=1 // pred_check_branch
      %20 = sbr.rel (0) target = $region17
    $region16: #{tpu_custom_call.1} parent=1 // pred_region
      _
    $region17: #{tpu_custom_call.1} parent=1 // pred_fallthru
      _
    %v21 = vld [vmem:[%s0] sm:$0xf]
    %v22 = vld [vmem:[%s0 + $0x4] sm:$0xf]
    %v23 = vld [vmem:[%s0 + $0x8] sm:$0xf]
    %v24 = vld [vmem:[%s0 + $0xc] sm:$0xf]
    %v25 = vld [vmem:[%s0 + $0x10] sm:$0xf]
    %v26 = vld [vmem:[%s0 + $0x14] sm:$0xf]
    %v27 = vld [vmem:[%s0 + $0x18] sm:$0xf]
    %v28 = vld [vmem:[%s0 + $0x1c] sm:$0xf]
    %v29 = vld [vmem:[%s0 + $0x20] sm:$0xf]
    %v30 = vld [vmem:[%s0 + $0x24] sm:$0xf]
    %v31 = vld [vmem:[%s0 + $0x28] sm:$0xf]
    %v32 = vld [vmem:[%s0 + $0x2c] sm:$0xf]
    %v33 = vld [vmem:[%s0 + $0x30] sm:$0xf]
    %v34 = vld [vmem:[%s0 + $0x34] sm:$0xf]
    %v35 = vld [vmem:[%s0 + $0x38] sm:$0xf]
    %v36 = vld [vmem:[%s0 + $0x3c] sm:$0xf]
    %v37 = vld [vmem:[%s0 + $0x40] sm:$0xf]
    %v38 = vld [vmem:[%s0 + $0x44] sm:$0xf]
    %v39 = vld [vmem:[%s0 + $0x48] sm:$0xf]
    %v40 = vld [vmem:[%s0 + $0x4c] sm:$0xf]
    %v41 = vld [vmem:[%s0 + $0x50] sm:$0xf]
    %v42 = vld [vmem:[%s0 + $0x54] sm:$0xf]
    %v43 = vld [vmem:[%s0 + $0x58] sm:$0xf]
    %v44 = vld [vmem:[%s0 + $0x5c] sm:$0xf]
    %v45 = vld [vmem:[%s0 + $0x60] sm:$0xf]
    %v46 = vld [vmem:[%s0 + $0x64] sm:$0xf]
    %v47 = vld [vmem:[%s0 + $0x68] sm:$0xf]
    %v48 = vld [vmem:[%s0 + $0x6c] sm:$0xf]
    %v49 = vld [vmem:[%s0 + $0x70] sm:$0xf]
    %v50 = vld [vmem:[%s0 + $0x74] sm:$0xf]
    %v51 = vld [vmem:[%s0 + $0x78] sm:$0xf]
    %v52 = vld [vmem:[%s0 + $0x7c] sm:$0xf]
    %v53 = vld [vmem:[%s1] sm:$0xf]
    %v54 = vld [vmem:[%s1 + $0x4] sm:$0xf]
    %v55 = vld [vmem:[%s1 + $0x8] sm:$0xf]
    %v56 = vld [vmem:[%s1 + $0xc] sm:$0xf]
    %v57 = vld [vmem:[%s1 + $0x10] sm:$0xf]
    %v58 = vld [vmem:[%s1 + $0x14] sm:$0xf]
    %v59 = vld [vmem:[%s1 + $0x18] sm:$0xf]
    %v60 = vld [vmem:[%s1 + $0x1c] sm:$0xf]
    %v61 = vld [vmem:[%s1 + $0x20] sm:$0xf]
    %v62 = vld [vmem:[%s1 + $0x24] sm:$0xf]
    %v63 = vld [vmem:[%s1 + $0x28] sm:$0xf]
    %v64 = vld [vmem:[%s1 + $0x2c] sm:$0xf]
    %v65 = vld [vmem:[%s1 + $0x30] sm:$0xf]
    %v66 = vld [vmem:[%s1 + $0x34] sm:$0xf]
    %v67 = vld [vmem:[%s1 + $0x38] sm:$0xf]
    %v68 = vld [vmem:[%s1 + $0x3c] sm:$0xf]
    %v69 = vld [vmem:[%s1 + $0x40] sm:$0xf]
    %v70 = vld [vmem:[%s1 + $0x44] sm:$0xf]
    %v71 = vld [vmem:[%s1 + $0x48] sm:$0xf]
    %v72 = vld [vmem:[%s1 + $0x4c] sm:$0xf]
    %v73 = vld [vmem:[%s1 + $0x50] sm:$0xf]
    %v74 = vld [vmem:[%s1 + $0x54] sm:$0xf]
    %v75 = vld [vmem:[%s1 + $0x58] sm:$0xf]
    %v76 = vld [vmem:[%s1 + $0x5c] sm:$0xf]
    %v77 = vld [vmem:[%s1 + $0x60] sm:$0xf]
    %v78 = vld [vmem:[%s1 + $0x64] sm:$0xf]
    %v79 = vld [vmem:[%s1 + $0x68] sm:$0xf]
    %v80 = vld [vmem:[%s1 + $0x6c] sm:$0xf]
    %v81 = vld [vmem:[%s1 + $0x70] sm:$0xf]
    %v82 = vld [vmem:[%s1 + $0x74] sm:$0xf]
    %v83 = vld [vmem:[%s1 + $0x78] sm:$0xf]
    %v84 = vld [vmem:[%s1 + $0x7c] sm:$0xf]
    %v117 = vunpack.c.l.b16 %v21
    %v118 = vunpack.c.l.b16 %v22
    %v119 = vunpack.c.l.b16 %v23
    %v120 = vunpack.c.l.b16 %v24
    %v121 = vunpack.c.l.b16 %v25
    %v122 = vunpack.c.l.b16 %v26
    %v123 = vunpack.c.l.b16 %v27
    %v124 = vunpack.c.l.b16 %v28
    %v125 = vunpack.c.l.b16 %v29
    %v126 = vunpack.c.l.b16 %v30
    %v127 = vunpack.c.l.b16 %v31
    %v128 = vunpack.c.l.b16 %v32
    %v129 = vunpack.c.l.b16 %v33
    %v130 = vunpack.c.l.b16 %v34
    %v131 = vunpack.c.l.b16 %v35
    %v132 = vunpack.c.l.b16 %v36
    %v133 = vunpack.c.l.b16 %v37
    %v134 = vunpack.c.l.b16 %v38
    %v135 = vunpack.c.l.b16 %v39
    %v136 = vunpack.c.l.b16 %v40
    %v137 = vunpack.c.l.b16 %v41
    %v138 = vunpack.c.l.b16 %v42
    %v139 = vunpack.c.l.b16 %v43
    %v140 = vunpack.c.l.b16 %v44
    %v141 = vunpack.c.l.b16 %v45
    %v142 = vunpack.c.l.b16 %v46
    %v143 = vunpack.c.l.b16 %v47
    %v144 = vunpack.c.l.b16 %v48
    %v145 = vunpack.c.l.b16 %v49
    %v146 = vunpack.c.l.b16 %v50
    %v147 = vunpack.c.l.b16 %v51
    %v148 = vunpack.c.l.b16 %v52
    %v149 = vpack.c.b16 %v118, %v117
    %v150 = vpack.c.b16 %v120, %v119
    %v151 = vpack.c.b16 %v122, %v121
    %v152 = vpack.c.b16 %v124, %v123
    %v153 = vpack.c.b16 %v126, %v125
    %v154 = vpack.c.b16 %v128, %v127
    %v155 = vpack.c.b16 %v130, %v129
    %v156 = vpack.c.b16 %v132, %v131
    %v157 = vpack.c.b16 %v134, %v133
    %v158 = vpack.c.b16 %v136, %v135
    %v159 = vpack.c.b16 %v138, %v137
    %v160 = vpack.c.b16 %v140, %v139
    %v161 = vpack.c.b16 %v142, %v141
    %v162 = vpack.c.b16 %v144, %v143
    %v163 = vpack.c.b16 %v146, %v145
    %v164 = vpack.c.b16 %v148, %v147
    %v197 = vunpack.c.l.b16 %v53
    %v198 = vunpack.c.l.b16 %v54
    %v199 = vunpack.c.l.b16 %v55
    %v200 = vunpack.c.l.b16 %v56
    %v201 = vunpack.c.l.b16 %v57
    %v202 = vunpack.c.l.b16 %v58
    %v203 = vunpack.c.l.b16 %v59
    %v204 = vunpack.c.l.b16 %v60
    %v205 = vunpack.c.l.b16 %v61
    %v206 = vunpack.c.l.b16 %v62
    %v207 = vunpack.c.l.b16 %v63
    %v208 = vunpack.c.l.b16 %v64
    %v209 = vunpack.c.l.b16 %v65
    %v210 = vunpack.c.l.b16 %v66
    %v211 = vunpack.c.l.b16 %v67
    %v212 = vunpack.c.l.b16 %v68
    %v213 = vunpack.c.l.b16 %v69
    %v214 = vunpack.c.l.b16 %v70
    %v215 = vunpack.c.l.b16 %v71
    %v216 = vunpack.c.l.b16 %v72
    %v217 = vunpack.c.l.b16 %v73
    %v218 = vunpack.c.l.b16 %v74
    %v219 = vunpack.c.l.b16 %v75
    %v220 = vunpack.c.l.b16 %v76
    %v221 = vunpack.c.l.b16 %v77
    %v222 = vunpack.c.l.b16 %v78
    %v223 = vunpack.c.l.b16 %v79
    %v224 = vunpack.c.l.b16 %v80
    %v225 = vunpack.c.l.b16 %v81
    %v226 = vunpack.c.l.b16 %v82
    %v227 = vunpack.c.l.b16 %v83
    %v228 = vunpack.c.l.b16 %v84
    %v229 = vpack.c.b16 %v198, %v197
    %v230 = vpack.c.b16 %v200, %v199
    %v231 = vpack.c.b16 %v202, %v201
    %v232 = vpack.c.b16 %v204, %v203
    %v233 = vpack.c.b16 %v206, %v205
    %v234 = vpack.c.b16 %v208, %v207
    %v235 = vpack.c.b16 %v210, %v209
    %v236 = vpack.c.b16 %v212, %v211
    %v237 = vpack.c.b16 %v214, %v213
    %v238 = vpack.c.b16 %v216, %v215
    %v239 = vpack.c.b16 %v218, %v217
    %v240 = vpack.c.b16 %v220, %v219
    %v241 = vpack.c.b16 %v222, %v221
    %v242 = vpack.c.b16 %v224, %v223
    %v243 = vpack.c.b16 %v226, %v225
    %v244 = vpack.c.b16 %v228, %v227
    %vm245 = vcmask 261120
    %v247 = vsel %vm245, %v149, 0
    %v250 = vsel %vm245, %v150, 0
    %v253 = vsel %vm245, %v151, 0
    %v256 = vsel %vm245, %v152, 0
    %v259 = vsel %vm245, %v153, 0
    %v262 = vsel %vm245, %v154, 0
    %v265 = vsel %vm245, %v155, 0
    %v268 = vsel %vm245, %v156, 0
    %v271 = vsel %vm245, %v157, 0
    %v274 = vsel %vm245, %v158, 0
    %v277 = vsel %vm245, %v159, 0
    %v280 = vsel %vm245, %v160, 0
    %v283 = vsel %vm245, %v161, 0
    %v286 = vsel %vm245, %v162, 0
    %v289 = vsel %vm245, %v163, 0
    %v292 = vsel %vm245, %v164, 0
    %v295 = vsel %vm245, %v229, 0
    %v298 = vsel %vm245, %v230, 0
    %v301 = vsel %vm245, %v231, 0
    %v304 = vsel %vm245, %v232, 0
    %v307 = vsel %vm245, %v233, 0
    %v310 = vsel %vm245, %v234, 0
    %v313 = vsel %vm245, %v235, 0
    %v316 = vsel %vm245, %v236, 0
    %v319 = vsel %vm245, %v237, 0
    %v322 = vsel %vm245, %v238, 0
    %v325 = vsel %vm245, %v239, 0
    %v328 = vsel %vm245, %v240, 0
    %v331 = vsel %vm245, %v241, 0
    %v334 = vsel %vm245, %v242, 0
    %v337 = vsel %vm245, %v243, 0
    %v340 = vsel %vm245, %v244, 0
    %342 = vmatpush.bf16.xpose.msra.mxu0 %v316
    %343 = vmatpush.bf16.xpose.msra.mxu0 %v313
    %344 = vmatpush.bf16.xpose.msra.mxu0 %v310
    %345 = vmatpush.bf16.xpose.msra.mxu0 %v307
    %346 = vmatpush.bf16.xpose.msra.mxu0 %v304
    %347 = vmatpush.bf16.xpose.msra.mxu0 %v301
    %348 = vmatpush.bf16.xpose.msra.mxu0 %v298
    %349 = vmatpush.bf16.xpose.msra.mxu0 %v295
    %350 = vmatmul.bf16.gmra.mxu0 %v247
    %v351 = vpop.f32.mrf.mxu0
    %v352 = vadd.f32 0.0, %v351
    %v353 = vpop.f32.mrf.mxu0
    %v354 = vadd.f32 0.0, %v353
    %355 = vmatmul.bf16.gmra.mxu0 %v250
    %v356 = vpop.f32.mrf.mxu0
    %v357 = vadd.f32 0.0, %v356
    %v358 = vpop.f32.mrf.mxu0
    %v359 = vadd.f32 0.0, %v358
    %360 = vmatmul.bf16.gmra.mxu0 %v253
    %v361 = vpop.f32.mrf.mxu0
    %v362 = vadd.f32 0.0, %v361
    %v363 = vpop.f32.mrf.mxu0
    %v364 = vadd.f32 0.0, %v363
    %365 = vmatmul.bf16.gmra.mxu0 %v256
    %v366 = vpop.f32.mrf.mxu0
    %v367 = vadd.f32 0.0, %v366
    %v368 = vpop.f32.mrf.mxu0
    %v369 = vadd.f32 0.0, %v368
    %370 = vmatmul.bf16.gmra.mxu0 %v259
    %v371 = vpop.f32.mrf.mxu0
    %v372 = vadd.f32 0.0, %v371
    %v373 = vpop.f32.mrf.mxu0
    %v374 = vadd.f32 0.0, %v373
    %375 = vmatmul.bf16.gmra.mxu0 %v262
    %v376 = vpop.f32.mrf.mxu0
    %v377 = vadd.f32 0.0, %v376
    %v378 = vpop.f32.mrf.mxu0
    %v379 = vadd.f32 0.0, %v378
    %380 = vmatmul.bf16.gmra.mxu0 %v265
    %v381 = vpop.f32.mrf.mxu0
    %v382 = vadd.f32 0.0, %v381
    %v383 = vpop.f32.mrf.mxu0
    %v384 = vadd.f32 0.0, %v383
    %385 = vmatmul.bf16.gmra.mxu0 %v268
    %v386 = vpop.f32.mrf.mxu0
    %v387 = vadd.f32 0.0, %v386
    %v388 = vpop.f32.mrf.mxu0
    %v389 = vadd.f32 0.0, %v388
    %390 = vmatmul.bf16.gmra.mxu0 %v271
    %v391 = vpop.f32.mrf.mxu0
    %v392 = vadd.f32 0.0, %v391
    %v393 = vpop.f32.mrf.mxu0
    %v394 = vadd.f32 0.0, %v393
    %395 = vmatmul.bf16.gmra.mxu0 %v274
    %v396 = vpop.f32.mrf.mxu0
    %v397 = vadd.f32 0.0, %v396
    %v398 = vpop.f32.mrf.mxu0
    %v399 = vadd.f32 0.0, %v398
    %400 = vmatmul.bf16.gmra.mxu0 %v277
    %v401 = vpop.f32.mrf.mxu0
    %v402 = vadd.f32 0.0, %v401
    %v403 = vpop.f32.mrf.mxu0
    %v404 = vadd.f32 0.0, %v403
    %405 = vmatmul.bf16.gmra.mxu0 %v280
    %v406 = vpop.f32.mrf.mxu0
    %v407 = vadd.f32 0.0, %v406
    %v408 = vpop.f32.mrf.mxu0
    %v409 = vadd.f32 0.0, %v408
    %410 = vmatmul.bf16.gmra.mxu0 %v283
    %v411 = vpop.f32.mrf.mxu0
    %v412 = vadd.f32 0.0, %v411
    %v413 = vpop.f32.mrf.mxu0
    %v414 = vadd.f32 0.0, %v413
    %415 = vmatmul.bf16.gmra.mxu0 %v286
    %v416 = vpop.f32.mrf.mxu0
    %v417 = vadd.f32 0.0, %v416
    %v418 = vpop.f32.mrf.mxu0
    %v419 = vadd.f32 0.0, %v418
    %420 = vmatmul.bf16.gmra.mxu0 %v289
    %v421 = vpop.f32.mrf.mxu0
    %v422 = vadd.f32 0.0, %v421
    %v423 = vpop.f32.mrf.mxu0
    %v424 = vadd.f32 0.0, %v423
    %425 = vmatmul.bf16.gmra.mxu0 %v292
    %v426 = vpop.f32.mrf.mxu0
    %v427 = vadd.f32 0.0, %v426
    %v428 = vpop.f32.mrf.mxu0
    %v429 = vadd.f32 0.0, %v428
    %430 = vdwg.mxu0
    %431 = vmatpush.bf16.xpose.msra.mxu0 %v340
    %432 = vmatpush.bf16.xpose.msra.mxu0 %v337
    %433 = vmatpush.bf16.xpose.msra.mxu0 %v334
    %434 = vmatpush.bf16.xpose.msra.mxu0 %v331
    %435 = vmatpush.bf16.xpose.msra.mxu0 %v328
    %436 = vmatpush.bf16.xpose.msra.mxu0 %v325
    %437 = vmatpush.bf16.xpose.msra.mxu0 %v322
    %438 = vmatpush.bf16.xpose.msra.mxu0 %v319
    %439 = vmatmul.bf16.gmra.mxu0 %v247
    %v440 = vpop.f32.mrf.mxu0
    %v441 = vadd.f32 0.0, %v440
    %v442 = vpop.f32.mrf.mxu0
    %v443 = vadd.f32 0.0, %v442
    %444 = vmatmul.bf16.gmra.mxu0 %v250
    %v445 = vpop.f32.mrf.mxu0
    %v446 = vadd.f32 0.0, %v445
    %v447 = vpop.f32.mrf.mxu0
    %v448 = vadd.f32 0.0, %v447
    %449 = vmatmul.bf16.gmra.mxu0 %v253
    %v450 = vpop.f32.mrf.mxu0
    %v451 = vadd.f32 0.0, %v450
    %v452 = vpop.f32.mrf.mxu0
    %v453 = vadd.f32 0.0, %v452
    %454 = vmatmul.bf16.gmra.mxu0 %v256
    %v455 = vpop.f32.mrf.mxu0
    %v456 = vadd.f32 0.0, %v455
    %v457 = vpop.f32.mrf.mxu0
    %v458 = vadd.f32 0.0, %v457
    %459 = vmatmul.bf16.gmra.mxu0 %v259
    %v460 = vpop.f32.mrf.mxu0
    %v461 = vadd.f32 0.0, %v460
    %v462 = vpop.f32.mrf.mxu0
    %v463 = vadd.f32 0.0, %v462
    %464 = vmatmul.bf16.gmra.mxu0 %v262
    %v465 = vpop.f32.mrf.mxu0
    %v466 = vadd.f32 0.0, %v465
    %v467 = vpop.f32.mrf.mxu0
    %v468 = vadd.f32 0.0, %v467
    %469 = vmatmul.bf16.gmra.mxu0 %v265
    %v470 = vpop.f32.mrf.mxu0
    %v471 = vadd.f32 0.0, %v470
    %v472 = vpop.f32.mrf.mxu0
    %v473 = vadd.f32 0.0, %v472
    %474 = vmatmul.bf16.gmra.mxu0 %v268
    %v475 = vpop.f32.mrf.mxu0
    %v476 = vadd.f32 0.0, %v475
    %v477 = vpop.f32.mrf.mxu0
    %v478 = vadd.f32 0.0, %v477
    %479 = vmatmul.bf16.gmra.mxu0 %v271
    %v480 = vpop.f32.mrf.mxu0
    %v481 = vadd.f32 0.0, %v480
    %v482 = vpop.f32.mrf.mxu0
    %v483 = vadd.f32 0.0, %v482
    %484 = vmatmul.bf16.gmra.mxu0 %v274
    %v485 = vpop.f32.mrf.mxu0
    %v486 = vadd.f32 0.0, %v485
    %v487 = vpop.f32.mrf.mxu0
    %v488 = vadd.f32 0.0, %v487
    %489 = vmatmul.bf16.gmra.mxu0 %v277
    %v490 = vpop.f32.mrf.mxu0
    %v491 = vadd.f32 0.0, %v490
    %v492 = vpop.f32.mrf.mxu0
    %v493 = vadd.f32 0.0, %v492
    %494 = vmatmul.bf16.gmra.mxu0 %v280
    %v495 = vpop.f32.mrf.mxu0
    %v496 = vadd.f32 0.0, %v495
    %v497 = vpop.f32.mrf.mxu0
    %v498 = vadd.f32 0.0, %v497
    %499 = vmatmul.bf16.gmra.mxu0 %v283
    %v500 = vpop.f32.mrf.mxu0
    %v501 = vadd.f32 0.0, %v500
    %v502 = vpop.f32.mrf.mxu0
    %v503 = vadd.f32 0.0, %v502
    %504 = vmatmul.bf16.gmra.mxu0 %v286
    %v505 = vpop.f32.mrf.mxu0
    %v506 = vadd.f32 0.0, %v505
    %v507 = vpop.f32.mrf.mxu0
    %v508 = vadd.f32 0.0, %v507
    %509 = vmatmul.bf16.gmra.mxu0 %v289
    %v510 = vpop.f32.mrf.mxu0
    %v511 = vadd.f32 0.0, %v510
    %v512 = vpop.f32.mrf.mxu0
    %v513 = vadd.f32 0.0, %v512
    %514 = vmatmul.bf16.gmra.mxu0 %v292
    %v515 = vpop.f32.mrf.mxu0
    %v516 = vadd.f32 0.0, %v515
    %v517 = vpop.f32.mrf.mxu0
    %v518 = vadd.f32 0.0, %v517
    %519 = vdwg.mxu0
    %v520 = vld [vmem:[%s2] sm:$0xff]
    %v521 = vld [vmem:[%s2 + $0x8] sm:$0xff]
    %v522 = vld [vmem:[%s2 + $0x10] sm:$0xff]
    %v523 = vld [vmem:[%s2 + $0x18] sm:$0xff]
    %v524 = vld [vmem:[%s2 + $0x20] sm:$0xff]
    %v525 = vld [vmem:[%s2 + $0x28] sm:$0xff]
    %v526 = vld [vmem:[%s2 + $0x30] sm:$0xff]
    %v527 = vld [vmem:[%s2 + $0x38] sm:$0xff]
    %v528 = vld [vmem:[%s2 + $0x40] sm:$0xff]
    %v529 = vld [vmem:[%s2 + $0x48] sm:$0xff]
    %v530 = vld [vmem:[%s2 + $0x50] sm:$0xff]
    %v531 = vld [vmem:[%s2 + $0x58] sm:$0xff]
    %v532 = vld [vmem:[%s2 + $0x60] sm:$0xff]
    %v533 = vld [vmem:[%s2 + $0x68] sm:$0xff]
    %v534 = vld [vmem:[%s2 + $0x70] sm:$0xff]
    %v535 = vld [vmem:[%s2 + $0x78] sm:$0xff]
    %v536 = vld [vmem:[%s2 + $0x80] sm:$0xff]
    %v537 = vld [vmem:[%s2 + $0x88] sm:$0xff]
    %v538 = vld [vmem:[%s2 + $0x90] sm:$0xff]
    %v539 = vld [vmem:[%s2 + $0x98] sm:$0xff]
    %v540 = vld [vmem:[%s2 + $0xa0] sm:$0xff]
    %v541 = vld [vmem:[%s2 + $0xa8] sm:$0xff]
    %v542 = vld [vmem:[%s2 + $0xb0] sm:$0xff]
    %v543 = vld [vmem:[%s2 + $0xb8] sm:$0xff]
    %v544 = vld [vmem:[%s2 + $0xc0] sm:$0xff]
    %v545 = vld [vmem:[%s2 + $0xc8] sm:$0xff]
    %v546 = vld [vmem:[%s2 + $0xd0] sm:$0xff]
    %v547 = vld [vmem:[%s2 + $0xd8] sm:$0xff]
    %v548 = vld [vmem:[%s2 + $0xe0] sm:$0xff]
    %v549 = vld [vmem:[%s2 + $0xe8] sm:$0xff]
    %v550 = vld [vmem:[%s2 + $0xf0] sm:$0xff]
    %v551 = vld [vmem:[%s2 + $0xf8] sm:$0xff]
    %v552 = vld [vmem:[%s3] sm:$0x3]
    %553 = vset.pattern.permute.xlu0 0
    %554 = vperm.xlu0 %553, %v520
    %v555 = vpop.permute.xlu0 %554
    %556 = vset.pattern.permute.xlu0 0
    %557 = vperm.xlu0 %556, %v521
    %v558 = vpop.permute.xlu0 %557
    %559 = vset.pattern.permute.xlu0 0
    %560 = vperm.xlu0 %559, %v522
    %v561 = vpop.permute.xlu0 %560
    %562 = vset.pattern.permute.xlu0 0
    %563 = vperm.xlu0 %562, %v523
    %v564 = vpop.permute.xlu0 %563
    %565 = vset.pattern.permute.xlu0 0
    %566 = vperm.xlu0 %565, %v524
    %v567 = vpop.permute.xlu0 %566
    %568 = vset.pattern.permute.xlu0 0
    %569 = vperm.xlu0 %568, %v525
    %v570 = vpop.permute.xlu0 %569
    %571 = vset.pattern.permute.xlu0 0
    %572 = vperm.xlu0 %571, %v526
    %v573 = vpop.permute.xlu0 %572
    %574 = vset.pattern.permute.xlu0 0
    %575 = vperm.xlu0 %574, %v527
    %v576 = vpop.permute.xlu0 %575
    %577 = vset.pattern.permute.xlu0 0
    %578 = vperm.xlu0 %577, %v528
    %v579 = vpop.permute.xlu0 %578
    %580 = vset.pattern.permute.xlu0 0
    %581 = vperm.xlu0 %580, %v529
    %v582 = vpop.permute.xlu0 %581
    %583 = vset.pattern.permute.xlu0 0
    %584 = vperm.xlu0 %583, %v530
    %v585 = vpop.permute.xlu0 %584
    %586 = vset.pattern.permute.xlu0 0
    %587 = vperm.xlu0 %586, %v531
    %v588 = vpop.permute.xlu0 %587
    %589 = vset.pattern.permute.xlu0 0
    %590 = vperm.xlu0 %589, %v532
    %v591 = vpop.permute.xlu0 %590
    %592 = vset.pattern.permute.xlu0 0
    %593 = vperm.xlu0 %592, %v533
    %v594 = vpop.permute.xlu0 %593
    %595 = vset.pattern.permute.xlu0 0
    %596 = vperm.xlu0 %595, %v534
    %v597 = vpop.permute.xlu0 %596
    %598 = vset.pattern.permute.xlu0 0
    %599 = vperm.xlu0 %598, %v535
    %v600 = vpop.permute.xlu0 %599
    %601 = vset.pattern.permute.xlu0 0
    %602 = vperm.xlu0 %601, %v536
    %v603 = vpop.permute.xlu0 %602
    %604 = vset.pattern.permute.xlu0 0
    %605 = vperm.xlu0 %604, %v537
    %v606 = vpop.permute.xlu0 %605
    %607 = vset.pattern.permute.xlu0 0
    %608 = vperm.xlu0 %607, %v538
    %v609 = vpop.permute.xlu0 %608
    %610 = vset.pattern.permute.xlu0 0
    %611 = vperm.xlu0 %610, %v539
    %v612 = vpop.permute.xlu0 %611
    %613 = vset.pattern.permute.xlu0 0
    %614 = vperm.xlu0 %613, %v540
    %v615 = vpop.permute.xlu0 %614
    %616 = vset.pattern.permute.xlu0 0
    %617 = vperm.xlu0 %616, %v541
    %v618 = vpop.permute.xlu0 %617
    %619 = vset.pattern.permute.xlu0 0
    %620 = vperm.xlu0 %619, %v542
    %v621 = vpop.permute.xlu0 %620
    %622 = vset.pattern.permute.xlu0 0
    %623 = vperm.xlu0 %622, %v543
    %v624 = vpop.permute.xlu0 %623
    %625 = vset.pattern.permute.xlu0 0
    %626 = vperm.xlu0 %625, %v544
    %v627 = vpop.permute.xlu0 %626
    %628 = vset.pattern.permute.xlu0 0
    %629 = vperm.xlu0 %628, %v545
    %v630 = vpop.permute.xlu0 %629
    %631 = vset.pattern.permute.xlu0 0
    %632 = vperm.xlu0 %631, %v546
    %v633 = vpop.permute.xlu0 %632
    %634 = vset.pattern.permute.xlu0 0
    %635 = vperm.xlu0 %634, %v547
    %v636 = vpop.permute.xlu0 %635
    %637 = vset.pattern.permute.xlu0 0
    %638 = vperm.xlu0 %637, %v548
    %v639 = vpop.permute.xlu0 %638
    %640 = vset.pattern.permute.xlu0 0
    %641 = vperm.xlu0 %640, %v549
    %v642 = vpop.permute.xlu0 %641
    %643 = vset.pattern.permute.xlu0 0
    %644 = vperm.xlu0 %643, %v550
    %v645 = vpop.permute.xlu0 %644
    %646 = vset.pattern.permute.xlu0 0
    %647 = vperm.xlu0 %646, %v551
    %v648 = vpop.permute.xlu0 %647
    %v649 = vperm.slane %v552, 0
    %v650 = vperm.slane %v552, 1
    %vm651 = vcmp.eq.s32.totalorder %v555, %v649
    %vm652 = vcmp.eq.s32.totalorder %v555, %v650
    %vm653 = vcmp.eq.s32.totalorder %v558, %v649
    %vm654 = vcmp.eq.s32.totalorder %v558, %v650
    %vm655 = vcmp.eq.s32.totalorder %v561, %v649
    %vm656 = vcmp.eq.s32.totalorder %v561, %v650
    %vm657 = vcmp.eq.s32.totalorder %v564, %v649
    %vm658 = vcmp.eq.s32.totalorder %v564, %v650
    %vm659 = vcmp.eq.s32.totalorder %v567, %v649
    %vm660 = vcmp.eq.s32.totalorder %v567, %v650
    %vm661 = vcmp.eq.s32.totalorder %v570, %v649
    %vm662 = vcmp.eq.s32.totalorder %v570, %v650
    %vm663 = vcmp.eq.s32.totalorder %v573, %v649
    %vm664 = vcmp.eq.s32.totalorder %v573, %v650
    %vm665 = vcmp.eq.s32.totalorder %v576, %v649
    %vm666 = vcmp.eq.s32.totalorder %v576, %v650
    %vm667 = vcmp.eq.s32.totalorder %v579, %v649
    %vm668 = vcmp.eq.s32.totalorder %v579, %v650
    %vm669 = vcmp.eq.s32.totalorder %v582, %v649
    %vm670 = vcmp.eq.s32.totalorder %v582, %v650
    %vm671 = vcmp.eq.s32.totalorder %v585, %v649
    %vm672 = vcmp.eq.s32.totalorder %v585, %v650
    %vm673 = vcmp.eq.s32.totalorder %v588, %v649
    %vm674 = vcmp.eq.s32.totalorder %v588, %v650
    %vm675 = vcmp.eq.s32.totalorder %v591, %v649
    %vm676 = vcmp.eq.s32.totalorder %v591, %v650
    %vm677 = vcmp.eq.s32.totalorder %v594, %v649
    %vm678 = vcmp.eq.s32.totalorder %v594, %v650
    %vm679 = vcmp.eq.s32.totalorder %v597, %v649
    %vm680 = vcmp.eq.s32.totalorder %v597, %v650
    %vm681 = vcmp.eq.s32.totalorder %v600, %v649
    %vm682 = vcmp.eq.s32.totalorder %v600, %v650
    %vm683 = vcmp.eq.s32.totalorder %v603, %v649
    %vm684 = vcmp.eq.s32.totalorder %v603, %v650
    %vm685 = vcmp.eq.s32.totalorder %v606, %v649
    %vm686 = vcmp.eq.s32.totalorder %v606, %v650
    %vm687 = vcmp.eq.s32.totalorder %v609, %v649
    %vm688 = vcmp.eq.s32.totalorder %v609, %v650
    %vm689 = vcmp.eq.s32.totalorder %v612, %v649
    %vm690 = vcmp.eq.s32.totalorder %v612, %v650
    %vm691 = vcmp.eq.s32.totalorder %v615, %v649
    %vm692 = vcmp.eq.s32.totalorder %v615, %v650
    %vm693 = vcmp.eq.s32.totalorder %v618, %v649
    %vm694 = vcmp.eq.s32.totalorder %v618, %v650
    %vm695 = vcmp.eq.s32.totalorder %v621, %v649
    %vm696 = vcmp.eq.s32.totalorder %v621, %v650
    %vm697 = vcmp.eq.s32.totalorder %v624, %v649
    %vm698 = vcmp.eq.s32.totalorder %v624, %v650
    %vm699 = vcmp.eq.s32.totalorder %v627, %v649
    %vm700 = vcmp.eq.s32.totalorder %v627, %v650
    %vm701 = vcmp.eq.s32.totalorder %v630, %v649
    %vm702 = vcmp.eq.s32.totalorder %v630, %v650
    %vm703 = vcmp.eq.s32.totalorder %v633, %v649
    %vm704 = vcmp.eq.s32.totalorder %v633, %v650
    %vm705 = vcmp.eq.s32.totalorder %v636, %v649
    %vm706 = vcmp.eq.s32.totalorder %v636, %v650
    %vm707 = vcmp.eq.s32.totalorder %v639, %v649
    %vm708 = vcmp.eq.s32.totalorder %v639, %v650
    %vm709 = vcmp.eq.s32.totalorder %v642, %v649
    %vm710 = vcmp.eq.s32.totalorder %v642, %v650
    %vm711 = vcmp.eq.s32.totalorder %v645, %v649
    %vm712 = vcmp.eq.s32.totalorder %v645, %v650
    %vm713 = vcmp.eq.s32.totalorder %v648, %v649
    %vm714 = vcmp.eq.s32.totalorder %v648, %v650
    %s715 = smul.u32 0, 256
    %v716 = vlaneseq
    %v717 = vshrl.u32 %v716, 7
    %v718 = vadd.s32 %v717, 8
    %v719 = vadd.s32 %v717, 16
    %v720 = vadd.s32 %v717, 24
    %v721 = vadd.s32 %v717, 32
    %v722 = vadd.s32 %v717, 40
    %v723 = vadd.s32 %v717, 48
    %v724 = vadd.s32 %v717, 56
    %v725 = vadd.s32 %v717, 64
    %v726 = vadd.s32 %v717, 72
    %v727 = vadd.s32 %v717, 80
    %v728 = vadd.s32 %v717, 88
    %v729 = vadd.s32 %v717, 96
    %v730 = vadd.s32 %v717, 104
    %v731 = vadd.s32 %v717, 112
    %v732 = vadd.s32 %v717, 120
    %v733 = vadd.s32 %v717, 128
    %v734 = vadd.s32 %v717, 136
    %v735 = vadd.s32 %v717, 144
    %v736 = vadd.s32 %v717, 152
    %v737 = vadd.s32 %v717, 160
    %v738 = vadd.s32 %v717, 168
    %v739 = vadd.s32 %v717, 176
    %v740 = vadd.s32 %v717, 184
    %v741 = vadd.s32 %v717, 192
    %v742 = vadd.s32 %v717, 200
    %v743 = vadd.s32 %v717, 208
    %v744 = vadd.s32 %v717, 216
    %v745 = vadd.s32 %v717, 224
    %v746 = vadd.s32 %v717, 232
    %v747 = vadd.s32 %v717, 240
    %v748 = vadd.s32 %v717, 248
    %v749 = vstv %s715
    %v750 = vadd.s32 %v749, %v717
    %v751 = vadd.s32 %v749, %v718
    %v752 = vadd.s32 %v749, %v719
    %v753 = vadd.s32 %v749, %v720
    %v754 = vadd.s32 %v749, %v721
    %v755 = vadd.s32 %v749, %v722
    %v756 = vadd.s32 %v749, %v723
    %v757 = vadd.s32 %v749, %v724
    %v758 = vadd.s32 %v749, %v725
    %v759 = vadd.s32 %v749, %v726
    %v760 = vadd.s32 %v749, %v727
    %v761 = vadd.s32 %v749, %v728
    %v762 = vadd.s32 %v749, %v729
    %v763 = vadd.s32 %v749, %v730
    %v764 = vadd.s32 %v749, %v731
    %v765 = vadd.s32 %v749, %v732
    %v766 = vadd.s32 %v749, %v733
    %v767 = vadd.s32 %v749, %v734
    %v768 = vadd.s32 %v749, %v735
    %v769 = vadd.s32 %v749, %v736
    %v770 = vadd.s32 %v749, %v737
    %v771 = vadd.s32 %v749, %v738
    %v772 = vadd.s32 %v749, %v739
    %v773 = vadd.s32 %v749, %v740
    %v774 = vadd.s32 %v749, %v741
    %v775 = vadd.s32 %v749, %v742
    %v776 = vadd.s32 %v749, %v743
    %v777 = vadd.s32 %v749, %v744
    %v778 = vadd.s32 %v749, %v745
    %v779 = vadd.s32 %v749, %v746
    %v780 = vadd.s32 %v749, %v747
    %v781 = vadd.s32 %v749, %v748
    %s782 = smul.u32 0, 256
    %v783 = vlaneseq
    %v784 = vand.u32 %v783, 127
    %v785 = vadd.s32 %v784, 128
    %v786 = vstv %s782
    %v787 = vadd.s32 %v786, %v784
    %v788 = vadd.s32 %v786, %v785
    %vm789 = vcmp.ne.s32.totalorder %v750, %v787
    %vm790 = vcmp.ne.s32.totalorder %v750, %v788
    %vm791 = vcmp.ne.s32.totalorder %v751, %v787
    %vm792 = vcmp.ne.s32.totalorder %v751, %v788
    %vm793 = vcmp.ne.s32.totalorder %v752, %v787
    %vm794 = vcmp.ne.s32.totalorder %v752, %v788
    %vm795 = vcmp.ne.s32.totalorder %v753, %v787
    %vm796 = vcmp.ne.s32.totalorder %v753, %v788
    %vm797 = vcmp.ne.s32.totalorder %v754, %v787
    %vm798 = vcmp.ne.s32.totalorder %v754, %v788
    %vm799 = vcmp.ne.s32.totalorder %v755, %v787
    %vm800 = vcmp.ne.s32.totalorder %v755, %v788
    %vm801 = vcmp.ne.s32.totalorder %v756, %v787
    %vm802 = vcmp.ne.s32.totalorder %v756, %v788
    %vm803 = vcmp.ne.s32.totalorder %v757, %v787
    %vm804 = vcmp.ne.s32.totalorder %v757, %v788
    %vm805 = vcmp.ne.s32.totalorder %v758, %v787
    %vm806 = vcmp.ne.s32.totalorder %v758, %v788
    %vm807 = vcmp.ne.s32.totalorder %v759, %v787
    %vm808 = vcmp.ne.s32.totalorder %v759, %v788
    %vm809 = vcmp.ne.s32.totalorder %v760, %v787
    %vm810 = vcmp.ne.s32.totalorder %v760, %v788
    %vm811 = vcmp.ne.s32.totalorder %v761, %v787
    %vm812 = vcmp.ne.s32.totalorder %v761, %v788
    %vm813 = vcmp.ne.s32.totalorder %v762, %v787
    %vm814 = vcmp.ne.s32.totalorder %v762, %v788
    %vm815 = vcmp.ne.s32.totalorder %v763, %v787
    %vm816 = vcmp.ne.s32.totalorder %v763, %v788
    %vm817 = vcmp.ne.s32.totalorder %v764, %v787
    %vm818 = vcmp.ne.s32.totalorder %v764, %v788
    %vm819 = vcmp.ne.s32.totalorder %v765, %v787
    %vm820 = vcmp.ne.s32.totalorder %v765, %v788
    %vm821 = vcmp.ne.s32.totalorder %v766, %v787
    %vm822 = vcmp.ne.s32.totalorder %v766, %v788
    %vm823 = vcmp.ne.s32.totalorder %v767, %v787
    %vm824 = vcmp.ne.s32.totalorder %v767, %v788
    %vm825 = vcmp.ne.s32.totalorder %v768, %v787
    %vm826 = vcmp.ne.s32.totalorder %v768, %v788
    %vm827 = vcmp.ne.s32.totalorder %v769, %v787
    %vm828 = vcmp.ne.s32.totalorder %v769, %v788
    %vm829 = vcmp.ne.s32.totalorder %v770, %v787
    %vm830 = vcmp.ne.s32.totalorder %v770, %v788
    %vm831 = vcmp.ne.s32.totalorder %v771, %v787
    %vm832 = vcmp.ne.s32.totalorder %v771, %v788
    %vm833 = vcmp.ne.s32.totalorder %v772, %v787
    %vm834 = vcmp.ne.s32.totalorder %v772, %v788
    %vm835 = vcmp.ne.s32.totalorder %v773, %v787
    %vm836 = vcmp.ne.s32.totalorder %v773, %v788
    %vm837 = vcmp.ne.s32.totalorder %v774, %v787
    %vm838 = vcmp.ne.s32.totalorder %v774, %v788
    %vm839 = vcmp.ne.s32.totalorder %v775, %v787
    %vm840 = vcmp.ne.s32.totalorder %v775, %v788
    %vm841 = vcmp.ne.s32.totalorder %v776, %v787
    %vm842 = vcmp.ne.s32.totalorder %v776, %v788
    %vm843 = vcmp.ne.s32.totalorder %v777, %v787
    %vm844 = vcmp.ne.s32.totalorder %v777, %v788
    %vm845 = vcmp.ne.s32.totalorder %v778, %v787
    %vm846 = vcmp.ne.s32.totalorder %v778, %v788
    %vm847 = vcmp.ne.s32.totalorder %v779, %v787
    %vm848 = vcmp.ne.s32.totalorder %v779, %v788
    %vm849 = vcmp.ne.s32.totalorder %v780, %v787
    %vm850 = vcmp.ne.s32.totalorder %v780, %v788
    %vm851 = vcmp.ne.s32.totalorder %v781, %v787
    %vm852 = vcmp.ne.s32.totalorder %v781, %v788
    %vm853 = vmand %vm651, %vm789
    %vm854 = vmand %vm652, %vm790
    %vm855 = vmand %vm653, %vm791
    %vm856 = vmand %vm654, %vm792
    %vm857 = vmand %vm655, %vm793
    %vm858 = vmand %vm656, %vm794
    %vm859 = vmand %vm657, %vm795
    %vm860 = vmand %vm658, %vm796
    %vm861 = vmand %vm659, %vm797
    %vm862 = vmand %vm660, %vm798
    %vm863 = vmand %vm661, %vm799
    %vm864 = vmand %vm662, %vm800
    %vm865 = vmand %vm663, %vm801
    %vm866 = vmand %vm664, %vm802
    %vm867 = vmand %vm665, %vm803
    %vm868 = vmand %vm666, %vm804
    %vm869 = vmand %vm667, %vm805
    %vm870 = vmand %vm668, %vm806
    %vm871 = vmand %vm669, %vm807
    %vm872 = vmand %vm670, %vm808
    %vm873 = vmand %vm671, %vm809
    %vm874 = vmand %vm672, %vm810
    %vm875 = vmand %vm673, %vm811
    %vm876 = vmand %vm674, %vm812
    %vm877 = vmand %vm675, %vm813
    %vm878 = vmand %vm676, %vm814
    %vm879 = vmand %vm677, %vm815
    %vm880 = vmand %vm678, %vm816
    %vm881 = vmand %vm679, %vm817
    %vm882 = vmand %vm680, %vm818
    %vm883 = vmand %vm681, %vm819
    %vm884 = vmand %vm682, %vm820
    %vm885 = vmand %vm683, %vm821
    %vm886 = vmand %vm684, %vm822
    %vm887 = vmand %vm685, %vm823
    %vm888 = vmand %vm686, %vm824
    %vm889 = vmand %vm687, %vm825
    %vm890 = vmand %vm688, %vm826
    %vm891 = vmand %vm689, %vm827
    %vm892 = vmand %vm690, %vm828
    %vm893 = vmand %vm691, %vm829
    %vm894 = vmand %vm692, %vm830
    %vm895 = vmand %vm693, %vm831
    %vm896 = vmand %vm694, %vm832
    %vm897 = vmand %vm695, %vm833
    %vm898 = vmand %vm696, %vm834
    %vm899 = vmand %vm697, %vm835
    %vm900 = vmand %vm698, %vm836
    %vm901 = vmand %vm699, %vm837
    %vm902 = vmand %vm700, %vm838
    %vm903 = vmand %vm701, %vm839
    %vm904 = vmand %vm702, %vm840
    %vm905 = vmand %vm703, %vm841
    %vm906 = vmand %vm704, %vm842
    %vm907 = vmand %vm705, %vm843
    %vm908 = vmand %vm706, %vm844
    %vm909 = vmand %vm707, %vm845
    %vm910 = vmand %vm708, %vm846
    %vm911 = vmand %vm709, %vm847
    %vm912 = vmand %vm710, %vm848
    %vm913 = vmand %vm711, %vm849
    %vm914 = vmand %vm712, %vm850
    %vm915 = vmand %vm713, %vm851
    %vm916 = vmand %vm714, %vm852
    %v917 = vsel %vm853, %v352, -1e+30
    %v918 = vsel %vm854, %v441, -1e+30
    %v919 = vsel %vm855, %v354, -1e+30
    %v920 = vsel %vm856, %v443, -1e+30
    %v921 = vsel %vm857, %v357, -1e+30
    %v922 = vsel %vm858, %v446, -1e+30
    %v923 = vsel %vm859, %v359, -1e+30
    %v924 = vsel %vm860, %v448, -1e+30
    %v925 = vsel %vm861, %v362, -1e+30
    %v926 = vsel %vm862, %v451, -1e+30
    %v927 = vsel %vm863, %v364, -1e+30
    %v928 = vsel %vm864, %v453, -1e+30
    %v929 = vsel %vm865, %v367, -1e+30
    %v930 = vsel %vm866, %v456, -1e+30
    %v931 = vsel %vm867, %v369, -1e+30
    %v932 = vsel %vm868, %v458, -1e+30
    %v933 = vsel %vm869, %v372, -1e+30
    %v934 = vsel %vm870, %v461, -1e+30
    %v935 = vsel %vm871, %v374, -1e+30
    %v936 = vsel %vm872, %v463, -1e+30
    %v937 = vsel %vm873, %v377, -1e+30
    %v938 = vsel %vm874, %v466, -1e+30
    %v939 = vsel %vm875, %v379, -1e+30
    %v940 = vsel %vm876, %v468, -1e+30
    %v941 = vsel %vm877, %v382, -1e+30
    %v942 = vsel %vm878, %v471, -1e+30
    %v943 = vsel %vm879, %v384, -1e+30
    %v944 = vsel %vm880, %v473, -1e+30
    %v945 = vsel %vm881, %v387, -1e+30
    %v946 = vsel %vm882, %v476, -1e+30
    %v947 = vsel %vm883, %v389, -1e+30
    %v948 = vsel %vm884, %v478, -1e+30
    %v949 = vsel %vm885, %v392, -1e+30
    %v950 = vsel %vm886, %v481, -1e+30
    %v951 = vsel %vm887, %v394, -1e+30
    %v952 = vsel %vm888, %v483, -1e+30
    %v953 = vsel %vm889, %v397, -1e+30
    %v954 = vsel %vm890, %v486, -1e+30
    %v955 = vsel %vm891, %v399, -1e+30
    %v956 = vsel %vm892, %v488, -1e+30
    %v957 = vsel %vm893, %v402, -1e+30
    %v958 = vsel %vm894, %v491, -1e+30
    %v959 = vsel %vm895, %v404, -1e+30
    %v960 = vsel %vm896, %v493, -1e+30
    %v961 = vsel %vm897, %v407, -1e+30
    %v962 = vsel %vm898, %v496, -1e+30
    %v963 = vsel %vm899, %v409, -1e+30
    %v964 = vsel %vm900, %v498, -1e+30
    %v965 = vsel %vm901, %v412, -1e+30
    %v966 = vsel %vm902, %v501, -1e+30
    %v967 = vsel %vm903, %v414, -1e+30
    %v968 = vsel %vm904, %v503, -1e+30
    %v969 = vsel %vm905, %v417, -1e+30
    %v970 = vsel %vm906, %v506, -1e+30
    %v971 = vsel %vm907, %v419, -1e+30
    %v972 = vsel %vm908, %v508, -1e+30
    %v973 = vsel %vm909, %v422, -1e+30
    %v974 = vsel %vm910, %v511, -1e+30
    %v975 = vsel %vm911, %v424, -1e+30
    %v976 = vsel %vm912, %v513, -1e+30
    %v977 = vsel %vm913, %v427, -1e+30
    %v978 = vsel %vm914, %v516, -1e+30
    %v979 = vsel %vm915, %v429, -1e+30
    %v980 = vsel %vm916, %v518, -1e+30
    %v981 = vpack.c.bf16 %v918, %v917
    %v982 = vpack.c.bf16 %v920, %v919
    %v983 = vpack.c.bf16 %v922, %v921
    %v984 = vpack.c.bf16 %v924, %v923
    %v985 = vpack.c.bf16 %v926, %v925
    %v986 = vpack.c.bf16 %v928, %v927
    %v987 = vpack.c.bf16 %v930, %v929
    %v988 = vpack.c.bf16 %v932, %v931
    %v989 = vpack.c.bf16 %v934, %v933
    %v990 = vpack.c.bf16 %v936, %v935
    %v991 = vpack.c.bf16 %v938, %v937
    %v992 = vpack.c.bf16 %v940, %v939
    %v993 = vpack.c.bf16 %v942, %v941
    %v994 = vpack.c.bf16 %v944, %v943
    %v995 = vpack.c.bf16 %v946, %v945
    %v996 = vpack.c.bf16 %v948, %v947
    %v997 = vpack.c.bf16 %v950, %v949
    %v998 = vpack.c.bf16 %v952, %v951
    %v999 = vpack.c.bf16 %v954, %v953
    %v1000 = vpack.c.bf16 %v956, %v955
    %v1001 = vpack.c.bf16 %v958, %v957
    %v1002 = vpack.c.bf16 %v960, %v959
    %v1003 = vpack.c.bf16 %v962, %v961
    %v1004 = vpack.c.bf16 %v964, %v963
    %v1005 = vpack.c.bf16 %v966, %v965
    %v1006 = vpack.c.bf16 %v968, %v967
    %v1007 = vpack.c.bf16 %v970, %v969
    %v1008 = vpack.c.bf16 %v972, %v971
    %v1009 = vpack.c.bf16 %v974, %v973
    %v1010 = vpack.c.bf16 %v976, %v975
    %v1011 = vpack.c.bf16 %v978, %v977
    %v1012 = vpack.c.bf16 %v980, %v979
    %1013 = vst [vmem:[#allocation2] sm:$0xff] %v981
    %1014 = vst [vmem:[#allocation2 + $0x8] sm:$0xff] %v982
    %1015 = vst [vmem:[#allocation2 + $0x10] sm:$0xff] %v983
    %1016 = vst [vmem:[#allocation2 + $0x18] sm:$0xff] %v984
    %1017 = vst [vmem:[#allocation2 + $0x20] sm:$0xff] %v985
    %1018 = vst [vmem:[#allocation2 + $0x28] sm:$0xff] %v986
    %1019 = vst [vmem:[#allocation2 + $0x30] sm:$0xff] %v987
    %1020 = vst [vmem:[#allocation2 + $0x38] sm:$0xff] %v988
    %1021 = vst [vmem:[#allocation2 + $0x40] sm:$0xff] %v989
    %1022 = vst [vmem:[#allocation2 + $0x48] sm:$0xff] %v990
    %1023 = vst [vmem:[#allocation2 + $0x50] sm:$0xff] %v991
    %1024 = vst [vmem:[#allocation2 + $0x58] sm:$0xff] %v992
    %1025 = vst [vmem:[#allocation2 + $0x60] sm:$0xff] %v993
    %1026 = vst [vmem:[#allocation2 + $0x68] sm:$0xff] %v994
    %1027 = vst [vmem:[#allocation2 + $0x70] sm:$0xff] %v995
    %1028 = vst [vmem:[#allocation2 + $0x78] sm:$0xff] %v996
    %1029 = vst [vmem:[#allocation2 + $0x80] sm:$0xff] %v997
    %1030 = vst [vmem:[#allocation2 + $0x88] sm:$0xff] %v998
    %1031 = vst [vmem:[#allocation2 + $0x90] sm:$0xff] %v999
    %1032 = vst [vmem:[#allocation2 + $0x98] sm:$0xff] %v1000
    %1033 = vst [vmem:[#allocation2 + $0xa0] sm:$0xff] %v1001
    %1034 = vst [vmem:[#allocation2 + $0xa8] sm:$0xff] %v1002
    %1035 = vst [vmem:[#allocation2 + $0xb0] sm:$0xff] %v1003
    %1036 = vst [vmem:[#allocation2 + $0xb8] sm:$0xff] %v1004
    %1037 = vst [vmem:[#allocation2 + $0xc0] sm:$0xff] %v1005
    %1038 = vst [vmem:[#allocation2 + $0xc8] sm:$0xff] %v1006
    %1039 = vst [vmem:[#allocation2 + $0xd0] sm:$0xff] %v1007
    %1040 = vst [vmem:[#allocation2 + $0xd8] sm:$0xff] %v1008
    %1041 = vst [vmem:[#allocation2 + $0xe0] sm:$0xff] %v1009
    %1042 = vst [vmem:[#allocation2 + $0xe8] sm:$0xff] %v1010
    %1043 = vst [vmem:[#allocation2 + $0xf0] sm:$0xff] %v1011
    %1044 = vst [vmem:[#allocation2 + $0xf8] sm:$0xff] %v1012
    %v1045 = vsel %vm651, -1e+30, %v352
    %v1046 = vsel %vm652, -1e+30, %v441
    %v1047 = vsel %vm653, -1e+30, %v354
    %v1048 = vsel %vm654, -1e+30, %v443
    %v1049 = vsel %vm655, -1e+30, %v357
    %v1050 = vsel %vm656, -1e+30, %v446
    %v1051 = vsel %vm657, -1e+30, %v359
    %v1052 = vsel %vm658, -1e+30, %v448
    %v1053 = vsel %vm659, -1e+30, %v362
    %v1054 = vsel %vm660, -1e+30, %v451
    %v1055 = vsel %vm661, -1e+30, %v364
    %v1056 = vsel %vm662, -1e+30, %v453
    %v1057 = vsel %vm663, -1e+30, %v367
    %v1058 = vsel %vm664, -1e+30, %v456
    %v1059 = vsel %vm665, -1e+30, %v369
    %v1060 = vsel %vm666, -1e+30, %v458
    %v1061 = vsel %vm667, -1e+30, %v372
    %v1062 = vsel %vm668, -1e+30, %v461
    %v1063 = vsel %vm669, -1e+30, %v374
    %v1064 = vsel %vm670, -1e+30, %v463
    %v1065 = vsel %vm671, -1e+30, %v377
    %v1066 = vsel %vm672, -1e+30, %v466
    %v1067 = vsel %vm673, -1e+30, %v379
    %v1068 = vsel %vm674, -1e+30, %v468
    %v1069 = vsel %vm675, -1e+30, %v382
    %v1070 = vsel %vm676, -1e+30, %v471
    %v1071 = vsel %vm677, -1e+30, %v384
    %v1072 = vsel %vm678, -1e+30, %v473
    %v1073 = vsel %vm679, -1e+30, %v387
    %v1074 = vsel %vm680, -1e+30, %v476
    %v1075 = vsel %vm681, -1e+30, %v389
    %v1076 = vsel %vm682, -1e+30, %v478
    %v1077 = vsel %vm683, -1e+30, %v392
    %v1078 = vsel %vm684, -1e+30, %v481
    %v1079 = vsel %vm685, -1e+30, %v394
    %v1080 = vsel %vm686, -1e+30, %v483
    %v1081 = vsel %vm687, -1e+30, %v397
    %v1082 = vsel %vm688, -1e+30, %v486
    %v1083 = vsel %vm689, -1e+30, %v399
    %v1084 = vsel %vm690, -1e+30, %v488
    %v1085 = vsel %vm691, -1e+30, %v402
    %v1086 = vsel %vm692, -1e+30, %v491
    %v1087 = vsel %vm693, -1e+30, %v404
    %v1088 = vsel %vm694, -1e+30, %v493
    %v1089 = vsel %vm695, -1e+30, %v407
    %v1090 = vsel %vm696, -1e+30, %v496
    %v1091 = vsel %vm697, -1e+30, %v409
    %v1092 = vsel %vm698, -1e+30, %v498
    %v1093 = vsel %vm699, -1e+30, %v412
    %v1094 = vsel %vm700, -1e+30, %v501
    %v1095 = vsel %vm701, -1e+30, %v414
    %v1096 = vsel %vm702, -1e+30, %v503
    %v1097 = vsel %vm703, -1e+30, %v417
    %v1098 = vsel %vm704, -1e+30, %v506
    %v1099 = vsel %vm705, -1e+30, %v419
    %v1100 = vsel %vm706, -1e+30, %v508
    %v1101 = vsel %vm707, -1e+30, %v422
    %v1102 = vsel %vm708, -1e+30, %v511
    %v1103 = vsel %vm709, -1e+30, %v424
    %v1104 = vsel %vm710, -1e+30, %v513
    %v1105 = vsel %vm711, -1e+30, %v427
    %v1106 = vsel %vm712, -1e+30, %v516
    %v1107 = vsel %vm713, -1e+30, %v429
    %v1108 = vsel %vm714, -1e+30, %v518
    %v1109 = vpack.c.bf16 %v1046, %v1045
    %v1110 = vpack.c.bf16 %v1048, %v1047
    %v1111 = vpack.c.bf16 %v1050, %v1049
    %v1112 = vpack.c.bf16 %v1052, %v1051
    %v1113 = vpack.c.bf16 %v1054, %v1053
    %v1114 = vpack.c.bf16 %v1056, %v1055
    %v1115 = vpack.c.bf16 %v1058, %v1057
    %v1116 = vpack.c.bf16 %v1060, %v1059
    %v1117 = vpack.c.bf16 %v1062, %v1061
    %v1118 = vpack.c.bf16 %v1064, %v1063
    %v1119 = vpack.c.bf16 %v1066, %v1065
    %v1120 = vpack.c.bf16 %v1068, %v1067
    %v1121 = vpack.c.bf16 %v1070, %v1069
    %v1122 = vpack.c.bf16 %v1072, %v1071
    %v1123 = vpack.c.bf16 %v1074, %v1073
    %v1124 = vpack.c.bf16 %v1076, %v1075
    %v1125 = vpack.c.bf16 %v1078, %v1077
    %v1126 = vpack.c.bf16 %v1080, %v1079
    %v1127 = vpack.c.bf16 %v1082, %v1081
    %v1128 = vpack.c.bf16 %v1084, %v1083
    %v1129 = vpack.c.bf16 %v1086, %v1085
    %v1130 = vpack.c.bf16 %v1088, %v1087
    %v1131 = vpack.c.bf16 %v1090, %v1089
    %v1132 = vpack.c.bf16 %v1092, %v1091
    %v1133 = vpack.c.bf16 %v1094, %v1093
    %v1134 = vpack.c.bf16 %v1096, %v1095
    %v1135 = vpack.c.bf16 %v1098, %v1097
    %v1136 = vpack.c.bf16 %v1100, %v1099
    %v1137 = vpack.c.bf16 %v1102, %v1101
    %v1138 = vpack.c.bf16 %v1104, %v1103
    %v1139 = vpack.c.bf16 %v1106, %v1105
    %v1140 = vpack.c.bf16 %v1108, %v1107
    %1141 = vst [vmem:[#allocation4] sm:$0xff] %v1109
    %1142 = vst [vmem:[#allocation4 + $0x8] sm:$0xff] %v1110
    %1143 = vst [vmem:[#allocation4 + $0x10] sm:$0xff] %v1111
    %1144 = vst [vmem:[#allocation4 + $0x18] sm:$0xff] %v1112
    %1145 = vst [vmem:[#allocation4 + $0x20] sm:$0xff] %v1113
    %1146 = vst [vmem:[#allocation4 + $0x28] sm:$0xff] %v1114
    %1147 = vst [vmem:[#allocation4 + $0x30] sm:$0xff] %v1115
    %1148 = vst [vmem:[#allocation4 + $0x38] sm:$0xff] %v1116
    %1149 = vst [vmem:[#allocation4 + $0x40] sm:$0xff] %v1117
    %1150 = vst [vmem:[#allocation4 + $0x48] sm:$0xff] %v1118
    %1151 = vst [vmem:[#allocation4 + $0x50] sm:$0xff] %v1119
    %1152 = vst [vmem:[#allocation4 + $0x58] sm:$0xff] %v1120
    %1153 = vst [vmem:[#allocation4 + $0x60] sm:$0xff] %v1121
    %1154 = vst [vmem:[#allocation4 + $0x68] sm:$0xff] %v1122
    %1155 = vst [vmem:[#allocation4 + $0x70] sm:$0xff] %v1123
    %1156 = vst [vmem:[#allocation4 + $0x78] sm:$0xff] %v1124
    %1157 = vst [vmem:[#allocation4 + $0x80] sm:$0xff] %v1125
    %1158 = vst [vmem:[#allocation4 + $0x88] sm:$0xff] %v1126
    %1159 = vst [vmem:[#allocation4 + $0x90] sm:$0xff] %v1127
    %1160 = vst [vmem:[#allocation4 + $0x98] sm:$0xff] %v1128
    %1161 = vst [vmem:[#allocation4 + $0xa0] sm:$0xff] %v1129
    %1162 = vst [vmem:[#allocation4 + $0xa8] sm:$0xff] %v1130
    %1163 = vst [vmem:[#allocation4 + $0xb0] sm:$0xff] %v1131
    %1164 = vst [vmem:[#allocation4 + $0xb8] sm:$0xff] %v1132
    %1165 = vst [vmem:[#allocation4 + $0xc0] sm:$0xff] %v1133
    %1166 = vst [vmem:[#allocation4 + $0xc8] sm:$0xff] %v1134
    %1167 = vst [vmem:[#allocation4 + $0xd0] sm:$0xff] %v1135
    %1168 = vst [vmem:[#allocation4 + $0xd8] sm:$0xff] %v1136
    %1169 = vst [vmem:[#allocation4 + $0xe0] sm:$0xff] %v1137
    %1170 = vst [vmem:[#allocation4 + $0xe8] sm:$0xff] %v1138
    %1171 = vst [vmem:[#allocation4 + $0xf0] sm:$0xff] %v1139
    %1172 = vst [vmem:[#allocation4 + $0xf8] sm:$0xff] %v1140
    // Predicated region
    $region18: #{tpu_custom_call.1} parent=1 // pred_check
      _
    $region19: #{tpu_custom_call.1} parent=1 // pred_check_branch
      %1174 = sbr.rel (0) target = $region21
    $region20: #{tpu_custom_call.1} parent=1 // pred_region
      %1176 = vsyncadd [#allocation3], 0
      %s1177 = sshll.u32 [#allocation2], 4
      %s1178 = int_to_ptr.vmem [resolvable:$true] %s1177
      %s1179 = sshll.u32 %s4, 4
      %s1180 = int_to_ptr.hbm [resolvable:$true] %s1179
      %1185 = dma.vmem_to_hbm [thread:$0]  %s1178, 4096, %s1180, [#allocation3], 128, 128, 8
    $region21: #{tpu_custom_call.1} parent=1 // pred_fallthru
      _
    // Predicated region
    $region22: #{tpu_custom_call.1} parent=1 // pred_check
      _
    $region23: #{tpu_custom_call.1} parent=1 // pred_check_branch
      %1187 = sbr.rel (0) target = $region25
    $region24: #{tpu_custom_call.1} parent=1 // pred_region
      %1189 = vsyncadd [#allocation5], 0
      %s1190 = sshll.u32 [#allocation4], 4
      %s1191 = int_to_ptr.vmem [resolvable:$true] %s1190
      %s1192 = sshll.u32 %s5, 4
      %s1193 = int_to_ptr.hbm [resolvable:$true] %s1192
      %1198 = dma.vmem_to_hbm [thread:$0]  %s1191, 4096, %s1193, [#allocation5], 128, 128, 8
    $region25: #{tpu_custom_call.1} parent=1 // pred_fallthru
      _
    // Predicated region
    $region26: #{tpu_custom_call.1} parent=1 // pred_check
      _
    $region27: #{tpu_custom_call.1} parent=1 // pred_check_branch
      %1200 = sbr.rel (0) target = $region29
    $region28: #{tpu_custom_call.1} parent=1 // pred_region
      %1202 = dma.done [#allocation3], 4096
    $region29: #{tpu_custom_call.1} parent=1 // pred_fallthru
      _
    // Predicated region
    $region30: #{tpu_custom_call.1} parent=1 // pred_check
      _
    $region31: #{tpu_custom_call.1} parent=1 // pred_check_branch
      %1204 = sbr.rel (0) target = $region33
    $region32: #{tpu_custom_call.1} parent=1 // pred_region
      %1206 = dma.done [#allocation5], 4096
    $region33: #{tpu_custom_call.1} parent=1 // pred_fallthru
      _
    %1207 = vsyncpa [#allocation3], 1
    %1208 = vsyncpa [#allocation5], 1

</llo_original>
